<compile_context>
chip_gen: v7x
topology: tpu7x:2x2x1
jax: 0.10.0
libtpu: 0.0.40
codegen_flags: <defaults>
</compile_context>

<pallas_src>
import functools

import jax
import jax.numpy as jnp
from jax import lax
from jax.experimental import pallas as pl
from jax.experimental.pallas import tpu as pltpu


# --------------------------------- kernel ------------------------------------

def _blur_kernel(x_ref, o_ref, *, H, W, taps, pad_lo):
    """Separable depthwise blur on a (cb, H*W) block of flattened planes.

    Replicate ("edge") padding is fused via clamped neighbour shifts:
    a pltpu.roll along the lane axis (by +-1 for the W pass, +-W for the H
    pass) combined with an edge mask reproduces x[..., clip(idx, 0, dim-1)]
    with zero extra HBM/VMEM traffic.  Chained clamped shifts compose exactly
    (clamp is idempotent), so only taps, cur and acc stay live.
    """
    fs = len(taps)
    pad_hi = fs - 1 - pad_lo
    L = H * W
    x = x_ref[...].astype(jnp.float32)          # single cast per tile

    if fs > 1:
        lane = lax.broadcasted_iota(jnp.int32, x.shape, 1)
        col = lane % W

    # ---- horizontal pass: r[h, w] = sum_j taps[j] * x[h, clip(w + j - pad_lo)]
    acc = taps[pad_lo] * x
    if pad_hi > 0:
        at_last_col = col == (W - 1)
        cur = x
        for d in range(1, pad_hi + 1):
            # cur[i] <- cur[i + 1] (clamped at the right edge of each row)
            cur = jnp.where(at_last_col, cur, pltpu.roll(cur, (-1) % L, 1))
            acc = acc + taps[pad_lo + d] * cur
    if pad_lo > 0:
        at_first_col = col == 0
        cur = x
        for d in range(1, pad_lo + 1):
            # cur[i] <- cur[i - 1] (clamped at the left edge of each row)
            cur = jnp.where(at_first_col, cur, pltpu.roll(cur, 1 % L, 1))
            acc = acc + taps[pad_lo - d] * cur
    r = acc

    # ---- vertical pass: out[h, w] = sum_i taps[i] * r[clip(h + i - pad_lo), w]
    out = taps[pad_lo] * r
    if pad_hi > 0:
        at_last_row = lane >= (L - W)
        cur = r
        for d in range(1, pad_hi + 1):
            # cur[k] <- cur[k + W] (clamped at the bottom row)
            cur = jnp.where(at_last_row, cur, pltpu.roll(cur, (-W) % L, 1))
            out = out + taps[pad_lo + d] * cur
    if pad_lo > 0:
        at_first_row = lane < W
        cur = r
        for d in range(1, pad_lo + 1):
            # cur[k] <- cur[k - W] (clamped at the top row)
            cur = jnp.where(at_first_row, cur, pltpu.roll(cur, W % L, 1))
            out = out + taps[pad_lo - d] * cur

    o_ref[...] = out.astype(o_ref.dtype)


# --------------------------------- wrapper -----------------------------------

def _normalized_taps(sfilter):
    s = [float(v) for v in sfilter]
    tot = sum(s)
    return tuple(v / tot for v in s)


def _vmem_limit_bytes():
    """Generation-aware scoped-VMEM request (v5e/v6e: 128 MiB phys, v7x: 64 MiB)."""
    cap = 64 * 1024 * 1024
    try:
        cap = int(pltpu.get_tpu_info().vmem_capacity_bytes)
    except Exception:
        pass  # conservative (v7x-safe) fallback
    return min(64 * 1024 * 1024, (cap * 3) // 4)


def blur(x, sfilter=(1.0, 1.0)):
    """Pallas equivalent of Blur.forward: replicate SamePad + depthwise conv (groups=C).

    The frozen torch filter is outer(sfilter, sfilter) / sum, i.e. separable with
    normalized 1-D taps applied along W then H; the taps are compile-time constants.
    """
    N, C, H, W = x.shape
    fs = len(sfilter)
    pad_lo = (fs - 1) // 2                      # SamePad low side; high side = fs // 2
    taps = _normalized_taps(sfilter)

    NC = N * C
    L = H * W
    x2 = x.reshape(NC, L)                       # contiguous reshape: no extra HBM pass

    vmem_limit = _vmem_limit_bytes()
    # Per-step pipelined footprint ~ 2x(in block) + 2x(out block) = 4 x block,
    # plus a few f32 intermediates; target block ~ vmem_limit / 16 (~3-4 MiB).
    target_block_bytes = max(512 * 1024, vmem_limit // 16)
    plane_bytes = L * x.dtype.itemsize

    # Whole-plane blocking: block second-to-last dim (cb) must be a multiple of
    # 8 or equal NC.  Keep >= 2 grid steps when NC is large so v7x's two
    # TensorCores both get work on this bandwidth-bound op.
    if NC >= 16:
        cb_cap = max(8, ((NC // 2) // 8) * 8)
    else:
        cb_cap = NC
    cb_fit = max(8, (target_block_bytes // plane_bytes) // 8 * 8)
    cb = min(NC, cb_cap, cb_fit)
    if cb < NC and cb % 8 != 0:                 # safety: keep (8,128) tiling rule
        cb = NC
    # TODO(synk): for very large planes (plane_bytes >> target_block_bytes) add an
    # H-tiled grid axis with a pad_lo/pad_hi row halo instead of whole-plane blocks.

    grid = (pl.cdiv(NC, cb),)
    kernel = functools.partial(_blur_kernel, H=H, W=W, taps=taps, pad_lo=pad_lo)

    out = pl.pallas_call(
        kernel,
        out_shape=jax.ShapeDtypeStruct((NC, L), x.dtype),
        grid=grid,
        in_specs=[pl.BlockSpec((cb, L), lambda i: (i, 0))],
        out_specs=pl.BlockSpec((cb, L), lambda i: (i, 0)),
        compiler_params=pltpu.CompilerParams(
            dimension_semantics=("parallel",),  # independent plane blocks
            vmem_limit_bytes=vmem_limit,
        ),
        cost_estimate=pl.CostEstimate(
            flops=2 * (2 * fs - 1) * N * C * H * W,
            transcendentals=0,
            bytes_accessed=2 * N * C * H * W * x.dtype.itemsize,
        ),
    )(x2)
    return out.reshape(N, C, H, W)


# ------------------------------ pure-JAX reference ---------------------------

def make_blur_filter(in_filters, sfilter=(1.0, 1.0)):
    """Mirrors Blur.__init__: outer(sfilter, sfilter), normalize, repeat per channel."""
    fp = jnp.asarray(sfilter, dtype=jnp.float32)
    f = jnp.outer(fp, fp)
    f = f / jnp.sum(f)
    return jnp.broadcast_to(f, (in_filters,) + f.shape)


def _blur_reference(x, filt):
    """Identical to F.conv2d(replicate-pad(x), filt, groups=C)."""
    N, C, H, W = x.shape
    _, kh, kw = filt.shape
    fs = kh
    pad_lo, pad_hi = (fs - 1) // 2, fs // 2
    x_pad = jnp.pad(
        x, ((0, 0), (0, 0), (pad_lo, pad_hi), (pad_lo, pad_hi)), mode="edge"
    )
    out = jnp.zeros_like(x)
    for i in range(kh):
        for j in range(kw):
            out = out + filt[:, i, j][None, :, None, None] * x_pad[:, :, i:i + H, j:j + W]
    return out


if __name__ == "__main__":
    N, C, H, W = 2, 4, 16, 16
    key = jax.random.PRNGKey(0)
    x = jax.random.normal(key, (N, C, H, W), dtype=jnp.float32)

    out = blur(x, sfilter=(1.0, 1.0))
    out = jax.block_until_ready(out)

    filt = make_blur_filter(C, sfilter=(1.0, 1.0))
    ref = _blur_reference(x, filt)
    assert out.shape == (N, C, H, W)
    assert jnp.allclose(out, ref, atol=1e-5, rtol=1e-5), "mismatch vs reference"

    print("KERNEL_OK")
</pallas_src>

<mosaic_0001>
module attributes {stable_mosaic.version = 11 : i64} {
  func.func @_blur_kernel(%arg0: i32, %arg1: memref<8x256xf32, #tpu.memory_space<vmem>>, %arg2: memref<8x256xf32, #tpu.memory_space<vmem>>) attributes {dimension_semantics = [#tpu.dimension_semantics<parallel>], iteration_bounds = array<i64: 1>, scalar_prefetch = 0 : i64, scratch_operands = 0 : i64, tpu.core_type = #tpu.core_type<tc>, window_params = [{transform_indices = @transform_0, window_bounds = array<i64: 8, 256>}, {transform_indices = @transform_1, window_bounds = array<i64: 8, 256>}]} {
    %c0 = arith.constant 0 : index
    %c0_0 = arith.constant 0 : index
    %0 = vector.load %arg1[%c0, %c0_0] : memref<8x256xf32, #tpu.memory_space<vmem>>, vector<8x256xf32>
    %1 = tpu.iota {dimensions = array<i32: 1>} : vector<8x256xi32>
    %c16_i32 = arith.constant 16 : i32
    %c0_i32 = arith.constant 0 : i32
    %2 = arith.cmpi eq, %c16_i32, %c0_i32 : i32
    %c1_i32 = arith.constant 1 : i32
    %3 = arith.select %2, %c1_i32, %c16_i32 : i32
    %4 = vector.broadcast %3 : i32 to vector<8x256xi32>
    %5 = arith.remsi %1, %4 : vector<8x256xi32>
    %c0_i32_1 = arith.constant 0 : i32
    %6 = vector.broadcast %c0_i32_1 : i32 to vector<8x256xi32>
    %7 = arith.cmpi ne, %5, %6 : vector<8x256xi32>
    %c0_i32_2 = arith.constant 0 : i32
    %8 = vector.broadcast %c0_i32_2 : i32 to vector<8x256xi32>
    %9 = arith.cmpi slt, %5, %8 : vector<8x256xi32>
    %c0_i32_3 = arith.constant 0 : i32
    %10 = arith.cmpi slt, %3, %c0_i32_3 : i32
    %11 = vector.broadcast %10 : i1 to vector<8x256xi1>
    %12 = vector.broadcast %11 : vector<8x256xi1> to vector<8x256xi1>
    %13 = arith.xori %9, %12 : vector<8x256xi1>
    %14 = arith.andi %13, %7 : vector<8x256xi1>
    %15 = vector.broadcast %3 : i32 to vector<8x256xi32>
    %16 = arith.addi %5, %15 : vector<8x256xi32>
    %17 = arith.select %14, %16, %5 : vector<8x256xi1>, vector<8x256xi32>
    %cst = arith.constant 5.000000e-01 : f32
    %18 = vector.broadcast %cst : f32 to vector<8x256xf32>
    %19 = arith.mulf %18, %0 : vector<8x256xf32>
    %c15_i32 = arith.constant 15 : i32
    %20 = vector.broadcast %c15_i32 : i32 to vector<8x256xi32>
    %21 = arith.cmpi eq, %17, %20 : vector<8x256xi32>
    %c255_i32 = arith.constant 255 : i32
    %22 = tpu.dynamic_rotate %0 by %c255_i32 dim 1 : vector<8x256xf32>, i32 -> vector<8x256xf32>
    %23 = arith.select %21, %0, %22 : vector<8x256xi1>, vector<8x256xf32>
    %cst_4 = arith.constant 5.000000e-01 : f32
    %24 = vector.broadcast %cst_4 : f32 to vector<8x256xf32>
    %25 = arith.mulf %24, %23 : vector<8x256xf32>
    %26 = arith.addf %19, %25 : vector<8x256xf32>
    %cst_5 = arith.constant 5.000000e-01 : f32
    %27 = vector.broadcast %cst_5 : f32 to vector<8x256xf32>
    %28 = arith.mulf %27, %26 : vector<8x256xf32>
    %c240_i32 = arith.constant 240 : i32
    %29 = vector.broadcast %c240_i32 : i32 to vector<8x256xi32>
    %30 = arith.cmpi sge, %1, %29 : vector<8x256xi32>
    %c240_i32_6 = arith.constant 240 : i32
    %31 = tpu.dynamic_rotate %26 by %c240_i32_6 dim 1 : vector<8x256xf32>, i32 -> vector<8x256xf32>
    %32 = arith.select %30, %26, %31 : vector<8x256xi1>, vector<8x256xf32>
    %cst_7 = arith.constant 5.000000e-01 : f32
    %33 = vector.broadcast %cst_7 : f32 to vector<8x256xf32>
    %34 = arith.mulf %33, %32 : vector<8x256xf32>
    %35 = arith.addf %28, %34 : vector<8x256xf32>
    %c0_8 = arith.constant 0 : index
    %c0_9 = arith.constant 0 : index
    %36 = vector.load %arg2[%c0_8, %c0_9] : memref<8x256xf32, #tpu.memory_space<vmem>>, vector<8x256xf32>
    tpu.vector_store %arg2[%c0_8, %c0_9], %35 {strides = array<i32>} : memref<8x256xf32, #tpu.memory_space<vmem>>, vector<8x256xf32>,
    return
  }
  func.func @transform_0(%arg0: i32) -> (i32, i32) {
    %c0_i32 = arith.constant 0 : i32
    %c0_i32_0 = arith.constant 0 : i32
    return %arg0, %c0_i32 : i32, i32
  }
  func.func @transform_1(%arg0: i32) -> (i32, i32) {
    %c0_i32 = arith.constant 0 : i32
    %c0_i32_0 = arith.constant 0 : i32
    return %arg0, %c0_i32 : i32, i32
  }
}

</mosaic_0001>

<llo_original>
// kernel: tpu_custom_call.1
$region0: #{tpu_custom_call.1}
  #allocation0 [shape = 'u32[]', space=smem, size = 0x4, offset = 0x4, fixed_abs, tag = 'smem constant byte address 0x4 - core index']
  #allocation1 [shape = 'u32[144,128]{1,0:T(1,128)}', space=vmem, size = 0x12000, scoped, tag = 'internal scratch']
  %s0 = inlined_call_operand.hbm [shape: f32[8,256], index: 0, kind: input, shape index: {}]
  %s1 = inlined_call_operand.hbm [shape: f32[8,256], index: 1, kind: output, shape index: {}]
  %s2 = sld [smem:[#allocation0]]
  $region18: #{tpu_custom_call.1} parent=0
    _
  %s4 = ssub.s32 1, %s2
  %s5 = scalar_select 0, %s4, %s2
  $region1: #{tpu_custom_call.1} parent=0
    #allocation2 [shape = 'u8[8192]{0}', space=vmem, size = 0x2000, scoped, tag = 'input window, operand 0, single buffered']
    #allocation3 [shape = 's32[1]{0}', space=sflag, size = 0x4, scoped, tag = 'scoped memory for tpu_custom_call.1']
    #allocation4 [shape = 's32[1]{0}', space=sflag, size = 0x4, scoped, tag = 'scoped memory for tpu_custom_call.1']
    #allocation5 [shape = 'u8[8192]{0}', space=vmem, size = 0x2000, scoped, tag = 'output window, operand 0, single buffered']
    %6 = vsyncpa [#allocation3], 0
    %7 = vsyncpa [#allocation4], 0
    // Predicated region
    $region2: #{tpu_custom_call.1} parent=1 // pred_check
      _
    $region3: #{tpu_custom_call.1} parent=1 // pred_check_branch
      %9 = sbr.rel (0) target = $region5
    $region4: #{tpu_custom_call.1} parent=1 // pred_region
      %s11 = ssub.s32 256, 256
      %12 = vsyncadd [#allocation3], %s11
      %s14 = sshll.u32 [#allocation2], 4
      %s15 = int_to_ptr.vmem [resolvable:$true] %s14
      %17 = dma.hbm_to_vmem [thread:$0]  %s0, 256, %s15, [#allocation3]
    $region5: #{tpu_custom_call.1} parent=1 // pred_fallthru
      _
    // Predicated region
    $region6: #{tpu_custom_call.1} parent=1 // pred_check
      _
    $region7: #{tpu_custom_call.1} parent=1 // pred_check_branch
      %19 = sbr.rel (0) target = $region9
    $region8: #{tpu_custom_call.1} parent=1 // pred_region
      %20 = dma.done [#allocation3], 256
    $region9: #{tpu_custom_call.1} parent=1 // pred_fallthru
      _
    %v21 = vld [vmem:[#allocation2] sm:$0xff]
    %v22 = vld [vmem:[#allocation2 + $0x8] sm:$0xff]
    %v23 = vlaneseq
    %v24 = vand.u32 %v23, 127
    %v25 = vadd.s32 %v24, 128
    %vm26 = vcmp.lt.s32.totalorder %v24, 0
    %v27 = vsub.s32 0, %v24
    %v28 = vsel %vm26, %v27, %v24
    %v29 = vshrl.u32 %v28, 4
    %v30 = vand.u32 %v28, 15
    %v31 = vsub.s32 0, %v30
    %v32 = vsel %vm26, %v31, %v30
    %vm33 = vcmp.lt.s32.totalorder %v25, 0
    %v34 = vsub.s32 0, %v25
    %v35 = vsel %vm33, %v34, %v25
    %v36 = vshrl.u32 %v35, 4
    %v37 = vand.u32 %v35, 15
    %v38 = vsub.s32 0, %v37
    %v39 = vsel %vm33, %v38, %v37
    %vm40 = vcmp.ne.s32.totalorder %v32, 0
    %vm41 = vcmp.ne.s32.totalorder %v39, 0
    %vm42 = vcmp.lt.s32.totalorder %v32, 0
    %vm43 = vcmp.lt.s32.totalorder %v39, 0
    %vm44 = vmand %vm42, %vm40
    %vm45 = vmand %vm43, %vm41
    %v46 = vadd.s32 %v32, 16
    %v47 = vadd.s32 %v39, 16
    %v48 = vsel %vm44, %v46, %v32
    %v49 = vsel %vm45, %v47, %v39
    %v50 = vmul.f32 %v21, 0.5
    %v51 = vmul.f32 %v22, 0.5
    %vm52 = vcmp.eq.s32.totalorder %v48, 15
    %vm53 = vcmp.eq.s32.totalorder %v49, 15
    %54 = vrot.lane.b32.xlu0 %v21, 127
    %v55 = vpop.permute.xlu0 %54
    %56 = vrot.lane.b32.xlu0 %v22, 127
    %v57 = vpop.permute.xlu0 %56
    %vm58 = vcmp.lt.s32.totalorder %v24, 127
    %v59 = vsel %vm58, %v55, %v57
    %v60 = vsel %vm58, %v57, %v55
    %v61 = vsel %vm52, %v21, %v59
    %v62 = vsel %vm53, %v22, %v60
    %v63 = vmul.f32 %v61, 0.5
    %v64 = vmul.f32 %v62, 0.5
    %v65 = vadd.f32 %v50, %v63
    %v66 = vadd.f32 %v51, %v64
    %v67 = vmul.f32 %v65, 0.5
    %v68 = vmul.f32 %v66, 0.5
    %vm69 = vcmp.ge.s32.totalorder %v24, 240
    %vm70 = vcmp.ge.s32.totalorder %v25, 240
    %71 = vrot.lane.b32.xlu0 %v65, 112
    %v72 = vpop.permute.xlu0 %71
    %73 = vrot.lane.b32.xlu0 %v66, 112
    %v74 = vpop.permute.xlu0 %73
    %vm75 = vcmp.lt.s32.totalorder %v24, 112
    %v76 = vsel %vm75, %v72, %v74
    %v77 = vsel %vm75, %v74, %v72
    %v78 = vsel %vm69, %v65, %v76
    %v79 = vsel %vm70, %v66, %v77
    %v80 = vmul.f32 %v78, 0.5
    %v81 = vmul.f32 %v79, 0.5
    %v82 = vadd.f32 %v67, %v80
    %v83 = vadd.f32 %v68, %v81
    %84 = vst [vmem:[#allocation5] sm:$0xff] %v82
    %85 = vst [vmem:[#allocation5 + $0x8] sm:$0xff] %v83
    // Predicated region
    $region10: #{tpu_custom_call.1} parent=1 // pred_check
      _
    $region11: #{tpu_custom_call.1} parent=1 // pred_check_branch
      %87 = sbr.rel (0) target = $region13
    $region12: #{tpu_custom_call.1} parent=1 // pred_region
      %s89 = ssub.s32 256, 256
      %90 = vsyncadd [#allocation4], %s89
      %s92 = sshll.u32 [#allocation5], 4
      %s93 = int_to_ptr.vmem [resolvable:$true] %s92
      %95 = dma.vmem_to_hbm [thread:$0]  %s93, 256, %s1, [#allocation4]
    $region13: #{tpu_custom_call.1} parent=1 // pred_fallthru
      _
    // Predicated region
    $region14: #{tpu_custom_call.1} parent=1 // pred_check
      _
    $region15: #{tpu_custom_call.1} parent=1 // pred_check_branch
      %97 = sbr.rel (0) target = $region17
    $region16: #{tpu_custom_call.1} parent=1 // pred_region
      %98 = dma.done [#allocation4], 256
    $region17: #{tpu_custom_call.1} parent=1 // pred_fallthru
      _
    %99 = vsyncpa [#allocation3], 1
    %100 = vsyncpa [#allocation4], 1

</llo_original>
